<compile_context>
chip_gen: v7x
topology: tpu7x:2x2x1
jax: 0.10.0
libtpu: 0.0.40
codegen_flags: <defaults>
</compile_context>

<pallas_src>
import functools

import jax
import jax.numpy as jnp
from jax.experimental import pallas as pl
from jax.experimental.pallas import tpu as pltpu


LANE = 128        # lane width: last block dim alignment
ROW_ALIGN = 16    # bf16 packs 16 rows per sublane group


def _round_up(x, m):
    return ((x + m - 1) // m) * m


def _pad2(a, rows, cols):
    """Zero-pad a 2-D array up to [rows, cols] (no-op if already that shape)."""
    r, c = a.shape
    if (r, c) == (rows, cols):
        return a
    return jnp.pad(a, ((0, rows - r), (0, cols - c)))


def _default_vmem_limit():
    """Generation-dependent scoped-VMEM budget (75% of physical, capped)."""
    try:
        info = pltpu.get_tpu_info()
        cap = getattr(info, "vmem_capacity_bytes", None)
        if cap:
            return min(int(cap) * 3 // 4, 100 * 1024 * 1024)
    except Exception:
        pass
    return 48 * 1024 * 1024  # safe for v7x's 64 MiB physical VMEM


VMEM_LIMIT_BYTES = _default_vmem_limit()


# -----------------------------------------------------------------------------
# Kernel 1a: resident-x matmul (lm_head, prefill-sized T).
#   Whole activation [Tp, Kp] lives in VMEM; the vocab weight streams once.
# -----------------------------------------------------------------------------
def _matmul_resident_kernel(x_ref, w_ref, o_ref):
    o_ref[...] = jnp.dot(
        x_ref[...], w_ref[...], preferred_element_type=jnp.float32
    ).astype(o_ref.dtype)


# -----------------------------------------------------------------------------
# Kernel 1b: general tiled matmul with f32 accumulator.
#   grid = (M//tm, N//tn, K//tk); output tile resident across K.
# -----------------------------------------------------------------------------
def _matmul_kernel(x_ref, w_ref, o_ref, acc_ref):
    k = pl.program_id(2)
    partial = jnp.dot(x_ref[...], w_ref[...], preferred_element_type=jnp.float32)

    @pl.when(k == 0)
    def _init():
        acc_ref[...] = partial          # first step: store (no zero-init pass)

    @pl.when(k > 0)
    def _acc():
        acc_ref[...] += partial

    @pl.when(k == pl.num_programs(2) - 1)
    def _store():
        o_ref[...] = acc_ref[...].astype(o_ref.dtype)


def pallas_linear(x, w, *, tm_base=512, tn_base=1024, tk_base=512,
                  resident_x=None):
    """y = x @ w with x:[T, K], w:[K, N] (w already transposed from torch)."""
    T, K = x.shape
    K2, N = w.shape
    assert K == K2, (x.shape, w.shape)
    itemsize = jnp.dtype(x.dtype).itemsize

    tn = min(tn_base, _round_up(N, LANE))
    Np = _round_up(N, tn)

    if resident_x is None:
        Kp_full = _round_up(K, LANE)
        Tp_full = _round_up(T, ROW_ALIGN)
        # x (2 bufs, conservative) + streamed weight/out column tiles (2 bufs).
        resident_est = (2 * Tp_full * Kp_full + 2 * Kp_full * tn
                        + 2 * Tp_full * tn) * itemsize
        resident_x = resident_est <= int(0.6 * VMEM_LIMIT_BYTES)

    if resident_x:
        # Single pass over the weight: grid over vocab tiles only.
        Kp = _round_up(K, LANE)
        Tp = _round_up(T, ROW_ALIGN)
        xp = _pad2(x, Tp, Kp)
        wp = _pad2(w, Kp, Np)
        out = pl.pallas_call(
            _matmul_resident_kernel,
            out_shape=jax.ShapeDtypeStruct((Tp, Np), x.dtype),
            grid_spec=pltpu.PrefetchScalarGridSpec(
                num_scalar_prefetch=0,
                grid=(Np // tn,),
                in_specs=[
                    pl.BlockSpec((Tp, Kp), lambda j: (0, 0)),   # resident
                    pl.BlockSpec((Kp, tn), lambda j: (0, j)),   # streams once
                ],
                out_specs=pl.BlockSpec((Tp, tn), lambda j: (0, j)),
            ),
            compiler_params=pltpu.CompilerParams(
                dimension_semantics=("parallel",),
                vmem_limit_bytes=VMEM_LIMIT_BYTES,
            ),
            cost_estimate=pl.CostEstimate(
                flops=2 * Tp * Kp * Np,
                transcendentals=0,
                bytes_accessed=(Tp * Kp + Kp * Np + Tp * Np) * itemsize,
            ),
        )(xp, wp)
    else:
        tm = min(tm_base, _round_up(T, ROW_ALIGN))
        tk = min(tk_base, _round_up(K, LANE))
        Tp, Kp = _round_up(T, tm), _round_up(K, tk)
        xp = _pad2(x, Tp, Kp)
        wp = _pad2(w, Kp, Np)
        out = pl.pallas_call(
            _matmul_kernel,
            out_shape=jax.ShapeDtypeStruct((Tp, Np), x.dtype),
            grid_spec=pltpu.PrefetchScalarGridSpec(
                num_scalar_prefetch=0,
                grid=(Tp // tm, Np // tn, Kp // tk),
                in_specs=[
                    pl.BlockSpec((tm, tk), lambda i, j, k: (i, k)),
                    pl.BlockSpec((tk, tn), lambda i, j, k: (k, j)),
                ],
                out_specs=pl.BlockSpec((tm, tn), lambda i, j, k: (i, j)),
                scratch_shapes=[pltpu.VMEM((tm, tn), jnp.float32)],
            ),
            compiler_params=pltpu.CompilerParams(
                dimension_semantics=("parallel", "parallel", "arbitrary"),
                vmem_limit_bytes=VMEM_LIMIT_BYTES,
            ),
            cost_estimate=pl.CostEstimate(
                flops=2 * Tp * Kp * Np,
                transcendentals=0,
                # Includes rereads: x read per vocab tile, w read per row tile.
                bytes_accessed=(Tp * Kp * (Np // tn)
                                + Kp * Np * (Tp // tm)
                                + Tp * Np) * itemsize,
            ),
        )(xp, wp)

    if (out.shape[0], out.shape[1]) != (T, N):
        out = out[:T, :N]
    return out


# -----------------------------------------------------------------------------
# Kernel 2: fused decoder layer  y = (x @ up) @ down  in a single pallas_call.
#   grid = (T//tm, I//ti).  The activation tile x:[tm, Hp] stays resident
#   across the intermediate axis (only weight tiles stream); the [tm, ti]
#   intermediate never touches HBM; the output accumulates in f32 VMEM.
# -----------------------------------------------------------------------------
def _fused_mlp_layer_kernel(x_ref, up_ref, down_ref, o_ref, acc_ref):
    j = pl.program_id(1)  # intermediate-dim tile (reduction axis for output)

    # up_proj partial:  [tm, Hp] @ [Hp, ti] -> f32 [tm, ti]
    inter = jnp.dot(x_ref[...], up_ref[...], preferred_element_type=jnp.float32)
    # down_proj partial: [tm, ti] @ [ti, Hp] -> f32 [tm, Hp]
    # (cast to bf16 between the matmuls matches the torch/jnp dtype flow)
    partial = jnp.dot(
        inter.astype(down_ref.dtype), down_ref[...],
        preferred_element_type=jnp.float32,
    )

    @pl.when(j == 0)
    def _init():
        acc_ref[...] = partial          # first step stores (no zero-init pass)

    @pl.when(j > 0)
    def _acc():
        acc_ref[...] += partial

    @pl.when(j == pl.num_programs(1) - 1)
    def _store():
        o_ref[...] = acc_ref[...].astype(o_ref.dtype)


def pallas_mlp_layer(x, up_w, down_w, *, tm_base=512, ti_base=512):
    """Fused  (x @ up_w) @ down_w  with x:[T, H], up_w:[H, I], down_w:[I, H]."""
    T, H = x.shape
    H2, I = up_w.shape
    I2, H3 = down_w.shape
    assert H == H2 and I == I2 and H == H3, (x.shape, up_w.shape, down_w.shape)
    itemsize = jnp.dtype(x.dtype).itemsize

    Hp = _round_up(H, LANE)             # hidden kept un-tiled inside the kernel
    tm = min(tm_base, _round_up(T, ROW_ALIGN))
    ti = min(ti_base, _round_up(I, LANE))

    # Explicit VMEM budget guard (v7x has only 64 MiB physical per TC).
    budget = int(0.8 * VMEM_LIMIT_BYTES)

    def _est(tm_, ti_):
        return (2 * tm_ * Hp * itemsize      # x   (double-buffered, conservative)
                + 2 * Hp * ti_ * itemsize    # up  (streams over I)
                + 2 * ti_ * Hp * itemsize    # down(streams over I)
                + 2 * tm_ * Hp * itemsize    # out
                + tm_ * Hp * 4)              # f32 accumulator

    while _est(tm, ti) > budget and ti >= 2 * LANE and (ti // 2) % LANE == 0:
        ti //= 2
    while (_est(tm, ti) > budget and tm >= 2 * ROW_ALIGN
           and (tm // 2) % ROW_ALIGN == 0):
        tm //= 2

    Tp = _round_up(T, tm)
    Ip = _round_up(I, ti)
    xp = _pad2(x, Tp, Hp)
    upp = _pad2(up_w, Hp, Ip)
    downp = _pad2(down_w, Ip, Hp)

    out = pl.pallas_call(
        _fused_mlp_layer_kernel,
        out_shape=jax.ShapeDtypeStruct((Tp, Hp), x.dtype),
        grid_spec=pltpu.PrefetchScalarGridSpec(
            num_scalar_prefetch=0,
            grid=(Tp // tm, Ip // ti),
            in_specs=[
                pl.BlockSpec((tm, Hp), lambda m, j: (m, 0)),   # resident across j
                pl.BlockSpec((Hp, ti), lambda m, j: (0, j)),   # streams over I
                pl.BlockSpec((ti, Hp), lambda m, j: (j, 0)),   # streams over I
            ],
            out_specs=pl.BlockSpec((tm, Hp), lambda m, j: (m, 0)),
            scratch_shapes=[pltpu.VMEM((tm, Hp), jnp.float32)],
        ),
        compiler_params=pltpu.CompilerParams(
            dimension_semantics=("parallel", "arbitrary"),
            vmem_limit_bytes=VMEM_LIMIT_BYTES,
        ),
        cost_estimate=pl.CostEstimate(
            flops=4 * Tp * Hp * Ip,                       # two matmuls
            transcendentals=0,
            # activations once each way + both weights reread per row tile
            bytes_accessed=(2 * Tp * Hp
                            + (2 * Hp * Ip) * (Tp // tm)) * itemsize,
        ),
    )(xp, upp, downp)

    if (Tp, Hp) != (T, H):
        out = out[:T, :H]
    return out


# -----------------------------------------------------------------------------
# Model: parameter construction + forward
# -----------------------------------------------------------------------------
def init_params(key, vocab_size, hidden_size, intermediate_size, num_layers,
                dtype=jnp.bfloat16):
    """Init mirroring MLPForCausalLM (normal, std=0.02).

    Weights are stored pre-transposed ([in, out]) and zero-padded so every
    feature dim is a multiple of 128 (lane-dense blocks, no re-pad per layer).
    Zero padding is mathematically a no-op for this model.
    """
    Hp = _round_up(hidden_size, LANE)
    Ip = _round_up(intermediate_size, LANE)
    Vp = _round_up(vocab_size, LANE)
    keys = jax.random.split(key, 2 + 2 * num_layers)

    def _w(k, shape, rows, cols):
        w = 0.02 * jax.random.normal(k, shape, jnp.float32)
        return _pad2(w, rows, cols).astype(dtype)

    embed = 0.02 * jax.random.normal(keys[0], (vocab_size, hidden_size), jnp.float32)
    # nn.Embedding(..., padding_idx=0) zeroes row 0 at construction.
    embed = embed.at[0].set(0.0)
    embed = _pad2(embed, vocab_size, Hp).astype(dtype)              # [V, Hp]

    params = {
        "embed": embed,
        "lm_head": _w(keys[1], (hidden_size, vocab_size), Hp, Vp),  # [Hp, Vp]
        "layers": [],
    }
    for l in range(num_layers):
        up = _w(keys[2 + 2 * l], (hidden_size, intermediate_size), Hp, Ip)    # [Hp, Ip]
        down = _w(keys[3 + 2 * l], (intermediate_size, hidden_size), Ip, Hp)  # [Ip, Hp]
        params["layers"].append({"up": up, "down": down})
    return params


@functools.partial(jax.jit, static_argnames=("vocab_size",))
def mlp_for_causal_lm_forward(params, input_ids, labels=None, *, vocab_size):
    """input_ids: [B, S] int32 -> logits [B, S, vocab]. `labels` unused (parity)."""
    B, S = input_ids.shape
    T = B * S
    hidden = jnp.take(params["embed"], input_ids.reshape(-1), axis=0)  # [T, Hp]

    # Hoist row padding: pad T once so every layer and the lm_head operate on
    # [Tp, Hp] without per-call pad/slice HBM round-trips.
    rt = min(512, _round_up(T, ROW_ALIGN))
    Tp = _round_up(T, rt)
    if Tp != T:
        hidden = jnp.pad(hidden, ((0, Tp - T), (0, 0)))

    for layer in params["layers"]:
        hidden = pallas_mlp_layer(hidden, layer["up"], layer["down"])  # fused up+down
    logits = pallas_linear(hidden, params["lm_head"])                  # [Tp, Vp]

    logits = logits[:T]
    return logits.reshape(B, S, -1)[..., :vocab_size]


def _reference_forward(params, input_ids, vocab_size):
    """Pure-jnp reference with the same dtype flow (bf16 storage, f32 accum)."""
    dt = params["embed"].dtype
    h = jnp.take(params["embed"], input_ids.reshape(-1), axis=0)
    for layer in params["layers"]:
        inter = jnp.dot(h, layer["up"], preferred_element_type=jnp.float32).astype(dt)
        h = jnp.dot(inter, layer["down"], preferred_element_type=jnp.float32).astype(dt)
    logits = jnp.dot(h, params["lm_head"], preferred_element_type=jnp.float32).astype(dt)
    B, S = input_ids.shape
    return logits.reshape(B, S, -1)[..., :vocab_size]


# -----------------------------------------------------------------------------
if __name__ == "__main__":
    # --- 1) Full-model test at small shapes consistent with the module -------
    VOCAB = 128
    HIDDEN = 32
    INTERMEDIATE = 64
    NUM_LAYERS = 2
    BATCH = 2
    SEQ = 8

    key = jax.random.PRNGKey(0)
    pkey, ikey, k1, k2, k3, k4, k5 = jax.random.split(key, 7)

    params = init_params(pkey, VOCAB, HIDDEN, INTERMEDIATE, NUM_LAYERS,
                         dtype=jnp.bfloat16)
    input_ids = jax.random.randint(ikey, (BATCH, SEQ), 0, VOCAB, dtype=jnp.int32)
    labels = input_ids  # unused by forward, present for signature parity

    logits = mlp_for_causal_lm_forward(params, input_ids, labels, vocab_size=VOCAB)
    logits = jax.block_until_ready(logits)

    ref = _reference_forward(params, input_ids, VOCAB)
    assert logits.shape == (BATCH, SEQ, VOCAB), logits.shape
    assert jnp.allclose(logits.astype(jnp.float32), ref.astype(jnp.float32),
                        rtol=2e-2, atol=1e-2), "model mismatch vs reference"

    # --- 2) Multi-tile test of the general tiled matmul (exercises k>0 path) -
    xt = jax.random.normal(k1, (40, 384), jnp.float32).astype(jnp.bfloat16)
    wt = jax.random.normal(k2, (384, 320), jnp.float32).astype(jnp.bfloat16)
    got = pallas_linear(xt, wt, tm_base=16, tn_base=128, tk_base=128,
                        resident_x=False)
    want = jnp.dot(xt, wt, preferred_element_type=jnp.float32).astype(jnp.bfloat16)
    got = jax.block_until_ready(got)
    assert jnp.allclose(got.astype(jnp.float32), want.astype(jnp.float32),
                        rtol=2e-2, atol=1e-2), "tiled matmul mismatch"

    # --- 3) Multi-tile test of the fused layer (exercises j>0 path + padding) -
    xm = jax.random.normal(k3, (40, 96), jnp.float32).astype(jnp.bfloat16)
    upm = jax.random.normal(k4, (96, 384), jnp.float32).astype(jnp.bfloat16)
    dnm = jax.random.normal(k5, (384, 96), jnp.float32).astype(jnp.bfloat16)
    got2 = pallas_mlp_layer(xm, upm, dnm, tm_base=16, ti_base=128)
    inter = jnp.dot(xm, upm, preferred_element_type=jnp.float32).astype(jnp.bfloat16)
    want2 = jnp.dot(inter, dnm, preferred_element_type=jnp.float32).astype(jnp.bfloat16)
    got2 = jax.block_until_ready(got2)
    assert jnp.allclose(got2.astype(jnp.float32), want2.astype(jnp.float32),
                        rtol=2e-2, atol=1e-2), "fused layer mismatch"

    print("KERNEL_OK")
</pallas_src>

<mosaic_0001>
module attributes {stable_mosaic.version = 11 : i64} {
  func.func @_fused_mlp_layer_kernel(%arg0: i32, %arg1: i32, %arg2: memref<16x128xbf16, #tpu.memory_space<vmem>>, %arg3: memref<128x128xbf16, #tpu.memory_space<vmem>>, %arg4: memref<128x128xbf16, #tpu.memory_space<vmem>>, %arg5: memref<16x128xbf16, #tpu.memory_space<vmem>>, %arg6: memref<16x128xf32, #tpu.memory_space<vmem>>) attributes {dimension_semantics = [#tpu.dimension_semantics<parallel>, #tpu.dimension_semantics<arbitrary>], iteration_bounds = array<i64: 1, 1>, scalar_prefetch = 0 : i64, scratch_operands = 1 : i64, tpu.core_type = #tpu.core_type<tc>, window_params = [{transform_indices = @transform_0, window_bounds = array<i64: 16, 128>}, {transform_indices = @transform_1, window_bounds = array<i64: 128, 128>}, {transform_indices = @transform_2, window_bounds = array<i64: 128, 128>}, {transform_indices = @transform_3, window_bounds = array<i64: 16, 128>}]} {
    %c0 = arith.constant 0 : index
    %c0_0 = arith.constant 0 : index
    %0 = vector.load %arg2[%c0, %c0_0] : memref<16x128xbf16, #tpu.memory_space<vmem>>, vector<16x128xbf16>
    %c0_1 = arith.constant 0 : index
    %c0_2 = arith.constant 0 : index
    %1 = vector.load %arg3[%c0_1, %c0_2] : memref<128x128xbf16, #tpu.memory_space<vmem>>, vector<128x128xbf16>
    %cst = arith.constant dense<0.000000e+00> : vector<16x128xf32>
    %2 = tpu.matmul %0, %1, %cst {dimension_numbers = #tpu.dot_dimension_numbers<[1], [0], [0], [1], [0, 0, 1, 1], [], []>} : vector<16x128xbf16>, vector<128x128xbf16>, vector<16x128xf32> -> vector<16x128xf32>
    %3 = arith.truncf %2 : vector<16x128xf32> to vector<16x128xbf16>
    %c0_3 = arith.constant 0 : index
    %c0_4 = arith.constant 0 : index
    %4 = vector.load %arg4[%c0_3, %c0_4] : memref<128x128xbf16, #tpu.memory_space<vmem>>, vector<128x128xbf16>
    %cst_5 = arith.constant dense<0.000000e+00> : vector<16x128xf32>
    %5 = tpu.matmul %3, %4, %cst_5 {dimension_numbers = #tpu.dot_dimension_numbers<[1], [0], [0], [1], [0, 0, 1, 1], [], []>} : vector<16x128xbf16>, vector<128x128xbf16>, vector<16x128xf32> -> vector<16x128xf32>
    %c0_i32 = arith.constant 0 : i32
    %6 = arith.cmpi eq, %arg1, %c0_i32 : i32
    %7 = arith.extui %6 : i1 to i32
    %c0_i32_6 = arith.constant 0 : i32
    %8 = arith.cmpi ne, %7, %c0_i32_6 : i32
    scf.if %8 {
      %c0_11 = arith.constant 0 : index
      %c0_12 = arith.constant 0 : index
      %15 = vector.load %arg6[%c0_11, %c0_12] : memref<16x128xf32, #tpu.memory_space<vmem>>, vector<16x128xf32>
      tpu.vector_store %arg6[%c0_11, %c0_12], %5 {strides = array<i32>} : memref<16x128xf32, #tpu.memory_space<vmem>>, vector<16x128xf32>,
    } else {
    }
    %c0_i32_7 = arith.constant 0 : i32
    %9 = arith.cmpi sgt, %arg1, %c0_i32_7 : i32
    %10 = arith.extui %9 : i1 to i32
    %c0_i32_8 = arith.constant 0 : i32
    %11 = arith.cmpi ne, %10, %c0_i32_8 : i32
    scf.if %11 {
      %c0_11 = arith.constant 0 : index
      %c0_12 = arith.constant 0 : index
      %15 = vector.load %arg6[%c0_11, %c0_12] : memref<16x128xf32, #tpu.memory_space<vmem>>, vector<16x128xf32>
      %16 = arith.addf %15, %5 : vector<16x128xf32>
      %c0_13 = arith.constant 0 : index
      %c0_14 = arith.constant 0 : index
      %17 = vector.load %arg6[%c0_13, %c0_14] : memref<16x128xf32, #tpu.memory_space<vmem>>, vector<16x128xf32>
      tpu.vector_store %arg6[%c0_13, %c0_14], %16 {strides = array<i32>} : memref<16x128xf32, #tpu.memory_space<vmem>>, vector<16x128xf32>,
    } else {
    }
    %c0_i32_9 = arith.constant 0 : i32
    %12 = arith.cmpi eq, %arg1, %c0_i32_9 : i32
    %13 = arith.extui %12 : i1 to i32
    %c0_i32_10 = arith.constant 0 : i32
    %14 = arith.cmpi ne, %13, %c0_i32_10 : i32
    scf.if %14 {
      %c0_11 = arith.constant 0 : index
      %c0_12 = arith.constant 0 : index
      %15 = vector.load %arg6[%c0_11, %c0_12] : memref<16x128xf32, #tpu.memory_space<vmem>>, vector<16x128xf32>
      %16 = arith.truncf %15 : vector<16x128xf32> to vector<16x128xbf16>
      %c0_13 = arith.constant 0 : index
      %c0_14 = arith.constant 0 : index
      %17 = vector.load %arg5[%c0_13, %c0_14] : memref<16x128xbf16, #tpu.memory_space<vmem>>, vector<16x128xbf16>
      tpu.vector_store %arg5[%c0_13, %c0_14], %16 {strides = array<i32>} : memref<16x128xbf16, #tpu.memory_space<vmem>>, vector<16x128xbf16>,
    } else {
    }
    return
  }
  func.func @transform_0(%arg0: i32, %arg1: i32) -> (i32, i32) {
    %c0_i32 = arith.constant 0 : i32
    %c0_i32_0 = arith.constant 0 : i32
    return %arg0, %c0_i32 : i32, i32
  }
  func.func @transform_1(%arg0: i32, %arg1: i32) -> (i32, i32) {
    %c0_i32 = arith.constant 0 : i32
    %c0_i32_0 = arith.constant 0 : i32
    return %c0_i32, %arg1 : i32, i32
  }
  func.func @transform_2(%arg0: i32, %arg1: i32) -> (i32, i32) {
    %c0_i32 = arith.constant 0 : i32
    %c0_i32_0 = arith.constant 0 : i32
    return %arg1, %c0_i32 : i32, i32
  }
  func.func @transform_3(%arg0: i32, %arg1: i32) -> (i32, i32) {
    %c0_i32 = arith.constant 0 : i32
    %c0_i32_0 = arith.constant 0 : i32
    return %arg0, %c0_i32 : i32, i32
  }
}

module attributes {stable_mosaic.version = 11 : i64} {
  func.func @_matmul_resident_kernel(%arg0: i32, %arg1: memref<16x128xbf16, #tpu.memory_space<vmem>>, %arg2: memref<128x128xbf16, #tpu.memory_space<vmem>>, %arg3: memref<16x128xbf16, #tpu.memory_space<vmem>>) attributes {dimension_semantics = [#tpu.dimension_semantics<parallel>], iteration_bounds = array<i64: 1>, scalar_prefetch = 0 : i64, scratch_operands = 0 : i64, tpu.core_type = #tpu.core_type<tc>, window_params = [{pipeline_mode = #tpu.pipeline_mode<synchronous>, transform_indices = @transform_0, window_bounds = array<i64: 16, 128>}, {transform_indices = @transform_1, window_bounds = array<i64: 128, 128>}, {transform_indices = @transform_2, window_bounds = array<i64: 16, 128>}]} {
    %c0 = arith.constant 0 : index
    %c0_0 = arith.constant 0 : index
    %0 = vector.load %arg1[%c0, %c0_0] : memref<16x128xbf16, #tpu.memory_space<vmem>>, vector<16x128xbf16>
    %c0_1 = arith.constant 0 : index
    %c0_2 = arith.constant 0 : index
    %1 = vector.load %arg2[%c0_1, %c0_2] : memref<128x128xbf16, #tpu.memory_space<vmem>>, vector<128x128xbf16>
    %cst = arith.constant dense<0.000000e+00> : vector<16x128xf32>
    %2 = tpu.matmul %0, %1, %cst {dimension_numbers = #tpu.dot_dimension_numbers<[1], [0], [0], [1], [0, 0, 1, 1], [], []>} : vector<16x128xbf16>, vector<128x128xbf16>, vector<16x128xf32> -> vector<16x128xf32>
    %3 = arith.truncf %2 : vector<16x128xf32> to vector<16x128xbf16>
    %c0_3 = arith.constant 0 : index
    %c0_4 = arith.constant 0 : index
    %4 = vector.load %arg3[%c0_3, %c0_4] : memref<16x128xbf16, #tpu.memory_space<vmem>>, vector<16x128xbf16>
    tpu.vector_store %arg3[%c0_3, %c0_4], %3 {strides = array<i32>} : memref<16x128xbf16, #tpu.memory_space<vmem>>, vector<16x128xbf16>,
    return
  }
  func.func @transform_0(%arg0: i32) -> (i32, i32) {
    %c0_i32 = arith.constant 0 : i32
    %c0_i32_0 = arith.constant 0 : i32
    %c0_i32_1 = arith.constant 0 : i32
    return %c0_i32, %c0_i32_0 : i32, i32
  }
  func.func @transform_1(%arg0: i32) -> (i32, i32) {
    %c0_i32 = arith.constant 0 : i32
    %c0_i32_0 = arith.constant 0 : i32
    return %c0_i32, %arg0 : i32, i32
  }
  func.func @transform_2(%arg0: i32) -> (i32, i32) {
    %c0_i32 = arith.constant 0 : i32
    %c0_i32_0 = arith.constant 0 : i32
    return %c0_i32, %arg0 : i32, i32
  }
}

</mosaic_0001>

<llo_original>
// kernel: mlp_for_causal_lm_forward.5
$region0: #{mlp_for_causal_lm_forward.5}
  #allocation0 [shape = 'u32[]', space=smem, size = 0x4, offset = 0x4, fixed_abs, tag = 'smem constant byte address 0x4 - core index']
  #allocation1 [shape = 'u32[144,128]{1,0:T(1,128)}', space=vmem, size = 0x12000, scoped, tag = 'internal scratch']
  %s0 = inlined_call_operand.vmem [shape: bf16[16,128], index: 0, kind: input, shape index: {}]
  %s1 = inlined_call_operand.vmem [shape: bf16[128,128], index: 1, kind: input, shape index: {}]
  %s2 = inlined_call_operand.hbm [shape: bf16[16,128], index: 2, kind: output, shape index: {}]
  %s3 = sld [smem:[#allocation0]]
  $region18: #{mlp_for_causal_lm_forward.5} parent=0
    _
  %s5 = ssub.s32 1, %s3
  %s6 = scalar_select 0, %s5, %s3
  $region1: #{mlp_for_causal_lm_forward.5} parent=0
    #allocation2 [shape = 'u8[4096]{0}', space=vmem, size = 0x1000, scoped, tag = 'output window, operand 0, single buffered']
    #allocation3 [shape = 's32[1]{0}', space=sflag, size = 0x4, scoped, tag = 'scoped memory for mlp_for_causal_lm_forward.5']
    %7 = vsyncpa [#allocation3], 0
    // Predicated region
    $region2: #{mlp_for_causal_lm_forward.5} parent=1 // pred_check
      _
    $region3: #{mlp_for_causal_lm_forward.5} parent=1 // pred_check_branch
      %9 = sbr.rel (0) target = $region5
    $region4: #{mlp_for_causal_lm_forward.5} parent=1 // pred_region
      _
    $region5: #{mlp_for_causal_lm_forward.5} parent=1 // pred_fallthru
      _
    // Predicated region
    $region6: #{mlp_for_causal_lm_forward.5} parent=1 // pred_check
      _
    $region7: #{mlp_for_causal_lm_forward.5} parent=1 // pred_check_branch
      %11 = sbr.rel (0) target = $region9
    $region8: #{mlp_for_causal_lm_forward.5} parent=1 // pred_region
      _
    $region9: #{mlp_for_causal_lm_forward.5} parent=1 // pred_fallthru
      _
    %v13 = vld [vmem:[%s0] sm:$0xf]
    %v14 = vld [vmem:[%s0 + $0x4] sm:$0xf]
    %v15 = vld [vmem:[%s1] sm:$0xf]
    %v16 = vld [vmem:[%s1 + $0x4] sm:$0xf]
    %v17 = vld [vmem:[%s1 + $0x8] sm:$0xf]
    %v18 = vld [vmem:[%s1 + $0xc] sm:$0xf]
    %v19 = vld [vmem:[%s1 + $0x10] sm:$0xf]
    %v20 = vld [vmem:[%s1 + $0x14] sm:$0xf]
    %v21 = vld [vmem:[%s1 + $0x18] sm:$0xf]
    %v22 = vld [vmem:[%s1 + $0x1c] sm:$0xf]
    %v23 = vld [vmem:[%s1 + $0x20] sm:$0xf]
    %v24 = vld [vmem:[%s1 + $0x24] sm:$0xf]
    %v25 = vld [vmem:[%s1 + $0x28] sm:$0xf]
    %v26 = vld [vmem:[%s1 + $0x2c] sm:$0xf]
    %v27 = vld [vmem:[%s1 + $0x30] sm:$0xf]
    %v28 = vld [vmem:[%s1 + $0x34] sm:$0xf]
    %v29 = vld [vmem:[%s1 + $0x38] sm:$0xf]
    %v30 = vld [vmem:[%s1 + $0x3c] sm:$0xf]
    %v33 = vunpack.c.l.b16 %v13
    %v34 = vunpack.c.l.b16 %v14
    %v35 = vpack.c.b16 %v34, %v33
    %v53 = vunpack.c.l.b16 %v15
    %v54 = vunpack.c.l.b16 %v16
    %v55 = vunpack.c.l.b16 %v17
    %v56 = vunpack.c.l.b16 %v18
    %v57 = vunpack.c.l.b16 %v19
    %v58 = vunpack.c.l.b16 %v20
    %v59 = vunpack.c.l.b16 %v21
    %v60 = vunpack.c.l.b16 %v22
    %v61 = vunpack.c.l.b16 %v23
    %v62 = vunpack.c.l.b16 %v24
    %v63 = vunpack.c.l.b16 %v25
    %v64 = vunpack.c.l.b16 %v26
    %v65 = vunpack.c.l.b16 %v27
    %v66 = vunpack.c.l.b16 %v28
    %v67 = vunpack.c.l.b16 %v29
    %v68 = vunpack.c.l.b16 %v30
    %v69 = vpack.c.b16 %v54, %v53
    %v70 = vpack.c.b16 %v56, %v55
    %v71 = vpack.c.b16 %v58, %v57
    %v72 = vpack.c.b16 %v60, %v59
    %v73 = vpack.c.b16 %v62, %v61
    %v74 = vpack.c.b16 %v64, %v63
    %v75 = vpack.c.b16 %v66, %v65
    %v76 = vpack.c.b16 %v68, %v67
    %85 = vmatprep.subr.bf16.mxu0 0
    %86 = vmatpush1.bf16.msra.mxu0 %v69
    %87 = vmatprep.subr.bf16.mxu0 0
    %88 = vmatpush1.bf16.msra.mxu0 %v70
    %89 = vmatprep.subr.bf16.mxu0 0
    %90 = vmatpush1.bf16.msra.mxu0 %v71
    %91 = vmatprep.subr.bf16.mxu0 0
    %92 = vmatpush1.bf16.msra.mxu0 %v72
    %93 = vmatprep.subr.bf16.mxu0 0
    %94 = vmatpush1.bf16.msra.mxu0 %v73
    %95 = vmatprep.subr.bf16.mxu0 0
    %96 = vmatpush1.bf16.msra.mxu0 %v74
    %97 = vmatprep.subr.bf16.mxu0 0
    %98 = vmatpush1.bf16.msra.mxu0 %v75
    %99 = vmatprep.subr.bf16.mxu0 0
    %100 = vmatpush1.bf16.msra.mxu0 %v76
    %101 = vmatprep.subr.bf16.mxu0 0
    %102 = vmatpush1.bf16.msra.mxu0 0
    %103 = vmatprep.subr.bf16.mxu0 0
    %104 = vmatpush1.bf16.msra.mxu0 0
    %105 = vmatprep.subr.bf16.mxu0 0
    %106 = vmatpush1.bf16.msra.mxu0 0
    %107 = vmatprep.subr.bf16.mxu0 0
    %108 = vmatpush1.bf16.msra.mxu0 0
    %109 = vmatprep.subr.bf16.mxu0 0
    %110 = vmatpush1.bf16.msra.mxu0 0
    %111 = vmatprep.subr.bf16.mxu0 0
    %112 = vmatpush1.bf16.msra.mxu0 0
    %113 = vmatprep.subr.bf16.mxu0 0
    %114 = vmatpush1.bf16.msra.mxu0 0
    %115 = vmatprep.subr.bf16.mxu0 0
    %116 = vmatpush1.bf16.msra.mxu0 0
    %117 = vmatprep.mubr.bf16.mxu0 0
    %118 = vmatmul.mubr.bf16.gmra.mrb[0].mxu0 %v35
    %v119 = vpop.f32.mrb[0].mxu0
    %v120 = vadd.f32 0.0, %v119
    %v121 = vpop.f32.mrb[0].mxu0
    %v122 = vpop.f32.mrb[0].mxu0
    %v123 = vadd.f32 0.0, %v122
    %v124 = vpop.f32.mrb[0].mxu0
    %125 = vdwg.mxu0
    %v126 = vpack.c.bf16 %v123, %v120
    %v128 = vunpack.c.l.b16 %v126
    %v129 = vunpack.c.h.b16 %v126
    %v130 = vpack.c.b16 %v128, %v128
    %v131 = vpack.c.b16 %v129, %v129
    %134 = vst [vmem:[#allocation2] sm:$0xf] %v130
    %135 = vst [vmem:[#allocation2 + $0x4] sm:$0xf] %v131
    // Predicated region
    $region10: #{mlp_for_causal_lm_forward.5} parent=1 // pred_check
      _
    $region11: #{mlp_for_causal_lm_forward.5} parent=1 // pred_check_branch
      %137 = sbr.rel (0) target = $region13
    $region12: #{mlp_for_causal_lm_forward.5} parent=1 // pred_region
      %s139 = ssub.s32 128, 128
      %140 = vsyncadd [#allocation3], %s139
      %s141 = sshll.u32 [#allocation2], 4
      %s142 = int_to_ptr.vmem [resolvable:$true] %s141
      %147 = dma.vmem_to_hbm [thread:$0]  %s142, 128, %s2, [#allocation3], 64, 64, 4
    $region13: #{mlp_for_causal_lm_forward.5} parent=1 // pred_fallthru
      _
    // Predicated region
    $region14: #{mlp_for_causal_lm_forward.5} parent=1 // pred_check
      _
    $region15: #{mlp_for_causal_lm_forward.5} parent=1 // pred_check_branch
      %149 = sbr.rel (0) target = $region17
    $region16: #{mlp_for_causal_lm_forward.5} parent=1 // pred_region
      %150 = dma.done [#allocation3], 128
    $region17: #{mlp_for_causal_lm_forward.5} parent=1 // pred_fallthru
      _
    %151 = vsyncpa [#allocation3], 1

// kernel: mlp_for_causal_lm_forward.3
$region0: #{mlp_for_causal_lm_forward.3}
  #allocation0 [shape = 'u32[]', space=smem, size = 0x4, offset = 0x4, fixed_abs, tag = 'smem constant byte address 0x4 - core index']
  #allocation1 [shape = 'u32[144,128]{1,0:T(1,128)}', space=vmem, size = 0x12000, scoped, tag = 'internal scratch']
  #allocation2 [shape = 'f32[16,128]{1,0:T(8,128)}', space=vmem, size = 0x2000, scoped, tag = 'scratch operand']
  %s0 = inlined_call_operand.vmem [shape: bf16[16,128], index: 0, kind: input, shape index: {}]
  %s1 = inlined_call_operand.vmem [shape: bf16[128,128], index: 1, kind: input, shape index: {}]
  %s2 = inlined_call_operand.vmem [shape: bf16[128,128], index: 2, kind: input, shape index: {}]
  %s3 = inlined_call_operand.vmem [shape: bf16[16,128], index: 3, kind: output, shape index: {}]
  %s4 = sld [smem:[#allocation0]]
  $region34: #{mlp_for_causal_lm_forward.3} parent=0
    _
  %s6 = ssub.s32 1, %s4
  %s7 = scalar_select 0, %s6, %s4
  // Predicated region
  $region2: #{mlp_for_causal_lm_forward.3} parent=0 // pred_check
    _
  $region3: #{mlp_for_causal_lm_forward.3} parent=0 // pred_check_branch
    %9 = sbr.rel (0) target = $region5
  $region4: #{mlp_for_causal_lm_forward.3} parent=0 // pred_region
    _
  $region5: #{mlp_for_causal_lm_forward.3} parent=0 // pred_fallthru
    _
  // Predicated region
  $region6: #{mlp_for_causal_lm_forward.3} parent=0 // pred_check
    _
  $region7: #{mlp_for_causal_lm_forward.3} parent=0 // pred_check_branch
    %11 = sbr.rel (0) target = $region9
  $region8: #{mlp_for_causal_lm_forward.3} parent=0 // pred_region
    _
  $region9: #{mlp_for_causal_lm_forward.3} parent=0 // pred_fallthru
    _
  // Predicated region
  $region10: #{mlp_for_causal_lm_forward.3} parent=0 // pred_check
    _
  $region11: #{mlp_for_causal_lm_forward.3} parent=0 // pred_check_branch
    %13 = sbr.rel (0) target = $region13
  $region12: #{mlp_for_causal_lm_forward.3} parent=0 // pred_region
    _
  $region13: #{mlp_for_causal_lm_forward.3} parent=0 // pred_fallthru
    _
  %v15 = vld [vmem:[%s0] sm:$0xf]
  %v16 = vld [vmem:[%s0 + $0x4] sm:$0xf]
  %v17 = vld [vmem:[%s1] sm:$0xf]
  %v18 = vld [vmem:[%s1 + $0x4] sm:$0xf]
  %v19 = vld [vmem:[%s1 + $0x8] sm:$0xf]
  %v20 = vld [vmem:[%s1 + $0xc] sm:$0xf]
  %v21 = vld [vmem:[%s1 + $0x10] sm:$0xf]
  %v22 = vld [vmem:[%s1 + $0x14] sm:$0xf]
  %v23 = vld [vmem:[%s1 + $0x18] sm:$0xf]
  %v24 = vld [vmem:[%s1 + $0x1c] sm:$0xf]
  %v25 = vld [vmem:[%s1 + $0x20] sm:$0xf]
  %v26 = vld [vmem:[%s1 + $0x24] sm:$0xf]
  %v27 = vld [vmem:[%s1 + $0x28] sm:$0xf]
  %v28 = vld [vmem:[%s1 + $0x2c] sm:$0xf]
  %v29 = vld [vmem:[%s1 + $0x30] sm:$0xf]
  %v30 = vld [vmem:[%s1 + $0x34] sm:$0xf]
  %v31 = vld [vmem:[%s1 + $0x38] sm:$0xf]
  %v32 = vld [vmem:[%s1 + $0x3c] sm:$0xf]
  %v35 = vunpack.c.l.b16 %v15
  %v36 = vunpack.c.l.b16 %v16
  %v37 = vpack.c.b16 %v36, %v35
  %v55 = vunpack.c.l.b16 %v17
  %v56 = vunpack.c.l.b16 %v18
  %v57 = vunpack.c.l.b16 %v19
  %v58 = vunpack.c.l.b16 %v20
  %v59 = vunpack.c.l.b16 %v21
  %v60 = vunpack.c.l.b16 %v22
  %v61 = vunpack.c.l.b16 %v23
  %v62 = vunpack.c.l.b16 %v24
  %v63 = vunpack.c.l.b16 %v25
  %v64 = vunpack.c.l.b16 %v26
  %v65 = vunpack.c.l.b16 %v27
  %v66 = vunpack.c.l.b16 %v28
  %v67 = vunpack.c.l.b16 %v29
  %v68 = vunpack.c.l.b16 %v30
  %v69 = vunpack.c.l.b16 %v31
  %v70 = vunpack.c.l.b16 %v32
  %v71 = vpack.c.b16 %v56, %v55
  %v72 = vpack.c.b16 %v58, %v57
  %v73 = vpack.c.b16 %v60, %v59
  %v74 = vpack.c.b16 %v62, %v61
  %v75 = vpack.c.b16 %v64, %v63
  %v76 = vpack.c.b16 %v66, %v65
  %v77 = vpack.c.b16 %v68, %v67
  %v78 = vpack.c.b16 %v70, %v69
  %87 = vmatprep.subr.bf16.mxu0 0
  %88 = vmatpush1.bf16.msra.mxu0 %v71
  %89 = vmatprep.subr.bf16.mxu0 0
  %90 = vmatpush1.bf16.msra.mxu0 %v72
  %91 = vmatprep.subr.bf16.mxu0 0
  %92 = vmatpush1.bf16.msra.mxu0 %v73
  %93 = vmatprep.subr.bf16.mxu0 0
  %94 = vmatpush1.bf16.msra.mxu0 %v74
  %95 = vmatprep.subr.bf16.mxu0 0
  %96 = vmatpush1.bf16.msra.mxu0 %v75
  %97 = vmatprep.subr.bf16.mxu0 0
  %98 = vmatpush1.bf16.msra.mxu0 %v76
  %99 = vmatprep.subr.bf16.mxu0 0
  %100 = vmatpush1.bf16.msra.mxu0 %v77
  %101 = vmatprep.subr.bf16.mxu0 0
  %102 = vmatpush1.bf16.msra.mxu0 %v78
  %103 = vmatprep.subr.bf16.mxu0 0
  %104 = vmatpush1.bf16.msra.mxu0 0
  %105 = vmatprep.subr.bf16.mxu0 0
  %106 = vmatpush1.bf16.msra.mxu0 0
  %107 = vmatprep.subr.bf16.mxu0 0
  %108 = vmatpush1.bf16.msra.mxu0 0
  %109 = vmatprep.subr.bf16.mxu0 0
  %110 = vmatpush1.bf16.msra.mxu0 0
  %111 = vmatprep.subr.bf16.mxu0 0
  %112 = vmatpush1.bf16.msra.mxu0 0
  %113 = vmatprep.subr.bf16.mxu0 0
  %114 = vmatpush1.bf16.msra.mxu0 0
  %115 = vmatprep.subr.bf16.mxu0 0
  %116 = vmatpush1.bf16.msra.mxu0 0
  %117 = vmatprep.subr.bf16.mxu0 0
  %118 = vmatpush1.bf16.msra.mxu0 0
  %119 = vmatprep.mubr.bf16.mxu0 0
  %120 = vmatmul.mubr.bf16.gmra.mrb[0].mxu0 %v37
  %v121 = vpop.f32.mrb[0].mxu0
  %v122 = vadd.f32 0.0, %v121
  %v123 = vpop.f32.mrb[0].mxu0
  %v124 = vpop.f32.mrb[0].mxu0
  %v125 = vadd.f32 0.0, %v124
  %v126 = vpop.f32.mrb[0].mxu0
  %127 = vdwg.mxu0
  %v128 = vpack.c.bf16 %v125, %v122
  %v129 = vld [vmem:[%s2] sm:$0xf]
  %v130 = vld [vmem:[%s2 + $0x4] sm:$0xf]
  %v131 = vld [vmem:[%s2 + $0x8] sm:$0xf]
  %v132 = vld [vmem:[%s2 + $0xc] sm:$0xf]
  %v133 = vld [vmem:[%s2 + $0x10] sm:$0xf]
  %v134 = vld [vmem:[%s2 + $0x14] sm:$0xf]
  %v135 = vld [vmem:[%s2 + $0x18] sm:$0xf]
  %v136 = vld [vmem:[%s2 + $0x1c] sm:$0xf]
  %v137 = vld [vmem:[%s2 + $0x20] sm:$0xf]
  %v138 = vld [vmem:[%s2 + $0x24] sm:$0xf]
  %v139 = vld [vmem:[%s2 + $0x28] sm:$0xf]
  %v140 = vld [vmem:[%s2 + $0x2c] sm:$0xf]
  %v141 = vld [vmem:[%s2 + $0x30] sm:$0xf]
  %v142 = vld [vmem:[%s2 + $0x34] sm:$0xf]
  %v143 = vld [vmem:[%s2 + $0x38] sm:$0xf]
  %v144 = vld [vmem:[%s2 + $0x3c] sm:$0xf]
  %v161 = vunpack.c.l.b16 %v129
  %v162 = vunpack.c.l.b16 %v130
  %v163 = vunpack.c.l.b16 %v131
  %v164 = vunpack.c.l.b16 %v132
  %v165 = vunpack.c.l.b16 %v133
  %v166 = vunpack.c.l.b16 %v134
  %v167 = vunpack.c.l.b16 %v135
  %v168 = vunpack.c.l.b16 %v136
  %v169 = vunpack.c.l.b16 %v137
  %v170 = vunpack.c.l.b16 %v138
  %v171 = vunpack.c.l.b16 %v139
  %v172 = vunpack.c.l.b16 %v140
  %v173 = vunpack.c.l.b16 %v141
  %v174 = vunpack.c.l.b16 %v142
  %v175 = vunpack.c.l.b16 %v143
  %v176 = vunpack.c.l.b16 %v144
  %v177 = vpack.c.b16 %v162, %v161
  %v178 = vpack.c.b16 %v164, %v163
  %v179 = vpack.c.b16 %v166, %v165
  %v180 = vpack.c.b16 %v168, %v167
  %v181 = vpack.c.b16 %v170, %v169
  %v182 = vpack.c.b16 %v172, %v171
  %v183 = vpack.c.b16 %v174, %v173
  %v184 = vpack.c.b16 %v176, %v175
  %193 = vmatprep.subr.bf16.mxu0 0
  %194 = vmatpush1.bf16.msra.mxu0 %v177
  %195 = vmatprep.subr.bf16.mxu0 0
  %196 = vmatpush1.bf16.msra.mxu0 %v178
  %197 = vmatprep.subr.bf16.mxu0 0
  %198 = vmatpush1.bf16.msra.mxu0 %v179
  %199 = vmatprep.subr.bf16.mxu0 0
  %200 = vmatpush1.bf16.msra.mxu0 %v180
  %201 = vmatprep.subr.bf16.mxu0 0
  %202 = vmatpush1.bf16.msra.mxu0 %v181
  %203 = vmatprep.subr.bf16.mxu0 0
  %204 = vmatpush1.bf16.msra.mxu0 %v182
  %205 = vmatprep.subr.bf16.mxu0 0
  %206 = vmatpush1.bf16.msra.mxu0 %v183
  %207 = vmatprep.subr.bf16.mxu0 0
  %208 = vmatpush1.bf16.msra.mxu0 %v184
  %209 = vmatprep.subr.bf16.mxu0 0
  %210 = vmatpush1.bf16.msra.mxu0 0
  %211 = vmatprep.subr.bf16.mxu0 0
  %212 = vmatpush1.bf16.msra.mxu0 0
  %213 = vmatprep.subr.bf16.mxu0 0
  %214 = vmatpush1.bf16.msra.mxu0 0
  %215 = vmatprep.subr.bf16.mxu0 0
  %216 = vmatpush1.bf16.msra.mxu0 0
  %217 = vmatprep.subr.bf16.mxu0 0
  %218 = vmatpush1.bf16.msra.mxu0 0
  %219 = vmatprep.subr.bf16.mxu0 0
  %220 = vmatpush1.bf16.msra.mxu0 0
  %221 = vmatprep.subr.bf16.mxu0 0
  %222 = vmatpush1.bf16.msra.mxu0 0
  %223 = vmatprep.subr.bf16.mxu0 0
  %224 = vmatpush1.bf16.msra.mxu0 0
  %225 = vmatprep.mubr.bf16.mxu0 0
  %226 = vmatmul.mubr.bf16.gmra.mrb[0].mxu0 %v128
  %v227 = vpop.f32.mrb[0].mxu0
  %v228 = vadd.f32 0.0, %v227
  %v229 = vpop.f32.mrb[0].mxu0
  %v230 = vpop.f32.mrb[0].mxu0
  %v231 = vadd.f32 0.0, %v230
  %v232 = vpop.f32.mrb[0].mxu0
  %233 = vdwg.mxu0
  %p234 = scmp.eq.s32.totalorder 0, 0
  // Predicated region
  $region14: #{mlp_for_causal_lm_forward.3} parent=0 // pred_check
    %p235 = pneg %p234
  $region15: #{mlp_for_causal_lm_forward.3} parent=0 // pred_check_branch
    %237 = sbr.rel (%p235) target = $region17
  $region16: #{mlp_for_causal_lm_forward.3} parent=0 // pred_region
    %238 = vst [vmem:[#allocation2] sm:$0xff] %v228
    %239 = vst [vmem:[#allocation2 + $0x8] sm:$0xff] %v231
  $region17: #{mlp_for_causal_lm_forward.3} parent=0 // pred_fallthru
    _
  %p240 = scmp.gt.s32.totalorder 0, 0
  // Predicated region
  $region18: #{mlp_for_causal_lm_forward.3} parent=0 // pred_check
    %p241 = pneg %p240
  $region19: #{mlp_for_causal_lm_forward.3} parent=0 // pred_check_branch
    %243 = sbr.rel (%p241) target = $region21
  $region20: #{mlp_for_causal_lm_forward.3} parent=0 // pred_region
    %v244 = vld [vmem:[#allocation2] sm:$0xff]
    %v245 = vld [vmem:[#allocation2 + $0x8] sm:$0xff]
    %v246 = vadd.f32 %v244, %v228
    %v247 = vadd.f32 %v245, %v231
    %248 = vst [vmem:[#allocation2] sm:$0xff] %v246
    %249 = vst [vmem:[#allocation2 + $0x8] sm:$0xff] %v247
  $region21: #{mlp_for_causal_lm_forward.3} parent=0 // pred_fallthru
    _
  // Predicated region
  $region22: #{mlp_for_causal_lm_forward.3} parent=0 // pred_check
    %p250 = pneg %p234
  $region23: #{mlp_for_causal_lm_forward.3} parent=0 // pred_check_branch
    %252 = sbr.rel (%p250) target = $region25
  $region24: #{mlp_for_causal_lm_forward.3} parent=0 // pred_region
    %v253 = vld [vmem:[#allocation2] sm:$0xff]
    %v254 = vld [vmem:[#allocation2 + $0x8] sm:$0xff]
    %v255 = vpack.c.bf16 %v254, %v253
    %v257 = vunpack.c.l.b16 %v255
    %v258 = vunpack.c.h.b16 %v255
    %v259 = vpack.c.b16 %v257, %v257
    %v260 = vpack.c.b16 %v258, %v258
    %263 = vst [vmem:[%s3] sm:$0xf] %v259
    %264 = vst [vmem:[%s3 + $0x4] sm:$0xf] %v260
  $region25: #{mlp_for_causal_lm_forward.3} parent=0 // pred_fallthru
    _
  // Predicated region
  $region26: #{mlp_for_causal_lm_forward.3} parent=0 // pred_check
    _
  $region27: #{mlp_for_causal_lm_forward.3} parent=0 // pred_check_branch
    %266 = sbr.rel (0) target = $region29
  $region28: #{mlp_for_causal_lm_forward.3} parent=0 // pred_region
    _
  $region29: #{mlp_for_causal_lm_forward.3} parent=0 // pred_fallthru
    _
  // Predicated region
  $region30: #{mlp_for_causal_lm_forward.3} parent=0 // pred_check
    _
  $region31: #{mlp_for_causal_lm_forward.3} parent=0 // pred_check_branch
    %268 = sbr.rel (0) target = $region33
  $region32: #{mlp_for_causal_lm_forward.3} parent=0 // pred_region
    _
  $region33: #{mlp_for_causal_lm_forward.3} parent=0 // pred_fallthru
    _

</llo_original>
